<compile_context>
chip_gen: v7x
topology: tpu7x:2x2x1
jax: 0.10.0
libtpu: 0.0.40
codegen_flags: <defaults>
</compile_context>

<pallas_src>
import functools

import jax
import jax.numpy as jnp
from jax import lax
from jax.experimental import pallas as pl
from jax.experimental.pallas import tpu as pltpu


def _gated_conv_kernel(w_ref, b_ref, p_ref, o_ref):
    # w_ref: (2*OC, K)  fused conv+mask weights (conv rows first)
    # b_ref: (2*OC, 1)  fused biases
    # p_ref: (K, TM)    transposed im2col patch tile
    # o_ref: (OC, TM)   gated output tile (lane-dense, TM % 128 == 0)
    y = jnp.dot(w_ref[...], p_ref[...],
                preferred_element_type=jnp.float32) + b_ref[...]
    oc = o_ref.shape[0]
    x = y[:oc, :]                                            # conv path
    m = y[oc:, :]                                            # mask path
    act = jnp.where(x >= 0, x, jnp.float32(0.2) * x)         # LeakyReLU(0.2)
    gate = pl.reciprocal(1.0 + jnp.exp(-m), approx=True)     # sigmoid (exp + vrcp on EUP)
    o_ref[...] = (act * gate).astype(o_ref.dtype)


def _im2col_t(x, kh, kw, stride, padding, dilation):
    """(B, Cin, H, W) -> P^T of shape (Cin*KH*KW, B*OH*OW).

    K is ordered (Cin, KH, KW) to match PyTorch Conv2d weight layout,
    M is ordered (B, OH, OW).
    """
    B, C, H, W = x.shape
    xp = jnp.pad(x, ((0, 0), (0, 0), (padding, padding), (padding, padding)))
    Hp, Wp = H + 2 * padding, W + 2 * padding
    OH = (Hp - dilation * (kh - 1) - 1) // stride + 1
    OW = (Wp - dilation * (kw - 1) - 1) // stride + 1
    cols = []
    for i in range(kh):
        for j in range(kw):
            hi, wj = i * dilation, j * dilation
            cols.append(xp[:, :, hi:hi + (OH - 1) * stride + 1:stride,
                               wj:wj + (OW - 1) * stride + 1:stride])  # (B, C, OH, OW)
    patches = jnp.stack(cols, axis=2)                  # (B, C, KH*KW, OH, OW)
    patches = patches.transpose(1, 2, 0, 3, 4)         # (C, KH*KW, B, OH, OW)
    return patches.reshape(C * kh * kw, B * OH * OW), OH, OW


@functools.partial(
    jax.jit, static_argnames=("stride", "padding", "dilation", "compute_dtype"))
def gated_conv2d(x, w, b, wm, bm, *, stride=1, padding=0, dilation=1,
                 compute_dtype=jnp.float32):
    """x: (B, Cin, H, W); w/wm: (OC, Cin, KH, KW); b/bm: (OC,). Returns (B, OC, OH, OW)."""
    B, Cin, H, W = x.shape
    OC, _, KH, KW = w.shape
    K = Cin * KH * KW

    pt, OH, OW = _im2col_t(x, KH, KW, stride, padding, dilation)   # (K, M)
    M = pt.shape[1]

    # Fuse conv + mask params -> a single MXU matmul per tile.
    w_cat = jnp.concatenate([w.reshape(OC, K), wm.reshape(OC, K)], axis=0)    # (2*OC, K)
    b_cat = jnp.concatenate([b, bm]).reshape(2 * OC, 1).astype(jnp.float32)   # (2*OC, 1)

    pt = pt.astype(compute_dtype)       # bf16 here on v6e/v7x halves HBM traffic
    w_cat = w_cat.astype(compute_dtype)

    # --- tile selection: biggest lane-aligned TM under a VMEM budget ---
    LANE = 128
    in_bytes = jnp.dtype(compute_dtype).itemsize
    out_bytes = jnp.dtype(x.dtype).itemsize

    def tile_bytes(tm):
        # double-buffered patch tile + double-buffered output tile + resident weights/bias
        return (2 * tm * K * in_bytes + 2 * tm * OC * out_bytes
                + 2 * OC * (K * in_bytes + 4))

    VMEM_BUDGET = 48 * 1024 * 1024      # conservative: fits v7x's 64 MiB physical VMEM
    TM = 128
    for cand in (4096, 2048, 1024, 512, 256, 128):
        if tile_bytes(cand) <= VMEM_BUDGET:
            TM = cand
            break
    TM = min(TM, pl.cdiv(M, LANE) * LANE)          # don't exceed (lane-padded) M
    if pl.cdiv(M, TM) < 2 and TM > LANE:           # keep >= 2 steps for v7x megacore
        TM = pl.cdiv(pl.cdiv(M, 2), LANE) * LANE
    grid_m = pl.cdiv(M, TM)
    M_pad = grid_m * TM
    if M_pad != M:                                 # ragged tail -> zero pad (sliced off later)
        pt = jnp.pad(pt, ((0, 0), (0, M_pad - M)))

    out = pl.pallas_call(
        _gated_conv_kernel,
        out_shape=jax.ShapeDtypeStruct((OC, M_pad), x.dtype),
        grid_spec=pltpu.PrefetchScalarGridSpec(
            num_scalar_prefetch=0,
            grid=(grid_m,),
            in_specs=[
                pl.BlockSpec((2 * OC, K), lambda i: (0, 0)),   # fused weights (resident)
                pl.BlockSpec((2 * OC, 1), lambda i: (0, 0)),   # fused biases (resident)
                pl.BlockSpec((K, TM), lambda i: (0, i)),       # patch tile (lane-dense)
            ],
            out_specs=pl.BlockSpec((OC, TM), lambda i: (0, i)),
        ),
        compiler_params=pltpu.CompilerParams(
            dimension_semantics=("parallel",),
            vmem_limit_bytes=int(min(100 * 2**20, max(32 * 2**20, 2 * tile_bytes(TM)))),
        ),
    )(w_cat, b_cat, pt)

    # (OC, M) is already channel-major: split M back into (B, OH, OW) and swap
    # the two leading axes (cheap vs. the previous full NHWC->NCHW pass).
    return out[:, :M].reshape(OC, B, OH, OW).transpose(1, 0, 2, 3)


def _reference(x, w, b, wm, bm, *, stride, padding, dilation):
    dn = lax.conv_dimension_numbers(x.shape, w.shape, ("NCHW", "OIHW", "NCHW"))

    def conv(wt, bt):
        y = lax.conv_general_dilated(
            x, wt, window_strides=(stride, stride),
            padding=[(padding, padding), (padding, padding)],
            rhs_dilation=(dilation, dilation), dimension_numbers=dn)
        return y + bt.reshape(1, -1, 1, 1)

    xc = conv(w, b)
    mc = conv(wm, bm)
    act = jnp.where(xc >= 0, xc, 0.2 * xc)
    return act * jax.nn.sigmoid(mc)


if __name__ == "__main__":
    # Module config: in_channels=4, out_channels=8, kernel_size=3, stride=1, padding=1
    B, Cin, H, W = 2, 4, 16, 16
    OC, KH, KW = 8, 3, 3
    stride, padding, dilation = 1, 1, 1

    key = jax.random.PRNGKey(0)
    kx, kw1, kb1, kw2, kb2 = jax.random.split(key, 5)
    x = jax.random.normal(kx, (B, Cin, H, W), dtype=jnp.float32)
    fan_in = Cin * KH * KW
    bound = 1.0 / (fan_in ** 0.5)  # PyTorch Conv2d default init bounds
    w = jax.random.uniform(kw1, (OC, Cin, KH, KW), minval=-bound, maxval=bound, dtype=jnp.float32)
    b = jax.random.uniform(kb1, (OC,), minval=-bound, maxval=bound, dtype=jnp.float32)
    wm = jax.random.uniform(kw2, (OC, Cin, KH, KW), minval=-bound, maxval=bound, dtype=jnp.float32)
    bm = jax.random.uniform(kb2, (OC,), minval=-bound, maxval=bound, dtype=jnp.float32)

    out = gated_conv2d(x, w, b, wm, bm, stride=stride, padding=padding, dilation=dilation)
    out = jax.block_until_ready(out)

    ref = _reference(x, w, b, wm, bm, stride=stride, padding=padding, dilation=dilation)
    assert out.shape == (B, OC, H, W)
    # Tolerance accounts for the approximate EUP reciprocal in the sigmoid.
    assert jnp.allclose(out, ref, atol=2e-3, rtol=2e-3), float(jnp.max(jnp.abs(out - ref)))
    print("KERNEL_OK")
</pallas_src>

<mosaic_0001>
module attributes {stable_mosaic.version = 11 : i64} {
  func.func @_gated_conv_kernel(%arg0: i32, %arg1: memref<16x36xf32, #tpu.memory_space<vmem>>, %arg2: memref<16x1xf32, #tpu.memory_space<vmem>>, %arg3: memref<36x256xf32, #tpu.memory_space<vmem>>, %arg4: memref<8x256xf32, #tpu.memory_space<vmem>>) attributes {dimension_semantics = [#tpu.dimension_semantics<parallel>], iteration_bounds = array<i64: 2>, scalar_prefetch = 0 : i64, scratch_operands = 0 : i64, tpu.core_type = #tpu.core_type<tc>, window_params = [{pipeline_mode = #tpu.pipeline_mode<synchronous>, transform_indices = @transform_0, window_bounds = array<i64: 16, 36>}, {pipeline_mode = #tpu.pipeline_mode<synchronous>, transform_indices = @transform_1, window_bounds = array<i64: 16, 1>}, {transform_indices = @transform_2, window_bounds = array<i64: 36, 256>}, {transform_indices = @transform_3, window_bounds = array<i64: 8, 256>}]} {
    %c0 = arith.constant 0 : index
    %c0_0 = arith.constant 0 : index
    %0 = vector.load %arg1[%c0, %c0_0] : memref<16x36xf32, #tpu.memory_space<vmem>>, vector<16x36xf32>
    %c0_1 = arith.constant 0 : index
    %c0_2 = arith.constant 0 : index
    %1 = vector.load %arg3[%c0_1, %c0_2] : memref<36x256xf32, #tpu.memory_space<vmem>>, vector<36x256xf32>
    %cst = arith.constant dense<0.000000e+00> : vector<16x256xf32>
    %2 = tpu.matmul %0, %1, %cst {dimension_numbers = #tpu.dot_dimension_numbers<[1], [0], [0], [1], [0, 0, 1, 1], [], []>} : vector<16x36xf32>, vector<36x256xf32>, vector<16x256xf32> -> vector<16x256xf32>
    %c0_3 = arith.constant 0 : index
    %c0_4 = arith.constant 0 : index
    %3 = vector.load %arg2[%c0_3, %c0_4] : memref<16x1xf32, #tpu.memory_space<vmem>>, vector<16x1xf32>
    %4 = vector.broadcast %3 : vector<16x1xf32> to vector<16x256xf32>
    %5 = arith.addf %2, %4 : vector<16x256xf32>
    %6 = vector.extract_strided_slice %5 {offsets = [0, 0], sizes = [8, 256], strides = [1, 1]} : vector<16x256xf32> to vector<8x256xf32>
    %7 = vector.extract_strided_slice %5 {offsets = [8, 0], sizes = [8, 256], strides = [1, 1]} : vector<16x256xf32> to vector<8x256xf32>
    %cst_5 = arith.constant 0.000000e+00 : f32
    %8 = vector.broadcast %cst_5 : f32 to vector<8x256xf32>
    %9 = arith.cmpf oge, %6, %8 : vector<8x256xf32>
    %cst_6 = arith.constant 2.000000e-01 : f32
    %10 = vector.broadcast %cst_6 : f32 to vector<8x256xf32>
    %11 = arith.mulf %10, %6 : vector<8x256xf32>
    %12 = arith.select %9, %6, %11 : vector<8x256xi1>, vector<8x256xf32>
    %cst_7 = arith.constant 0.000000e+00 : f32
    %13 = vector.broadcast %cst_7 : f32 to vector<8x256xf32>
    %14 = arith.subf %13, %7 : vector<8x256xf32>
    %15 = math.exp %14 : vector<8x256xf32>
    %cst_8 = arith.constant 1.000000e+00 : f32
    %16 = vector.broadcast %cst_8 : f32 to vector<8x256xf32>
    %17 = arith.addf %16, %15 : vector<8x256xf32>
    %18 = tpu.reciprocal %17 {approx = true} : vector<8x256xf32> -> vector<8x256xf32>
    %19 = arith.mulf %12, %18 : vector<8x256xf32>
    %c0_9 = arith.constant 0 : index
    %c0_10 = arith.constant 0 : index
    %20 = vector.load %arg4[%c0_9, %c0_10] : memref<8x256xf32, #tpu.memory_space<vmem>>, vector<8x256xf32>
    tpu.vector_store %arg4[%c0_9, %c0_10], %19 {strides = array<i32>} : memref<8x256xf32, #tpu.memory_space<vmem>>, vector<8x256xf32>,
    return
  }
  func.func @transform_0(%arg0: i32) -> (i32, i32) {
    %c0_i32 = arith.constant 0 : i32
    %c0_i32_0 = arith.constant 0 : i32
    %c0_i32_1 = arith.constant 0 : i32
    return %c0_i32, %c0_i32_0 : i32, i32
  }
  func.func @transform_1(%arg0: i32) -> (i32, i32) {
    %c0_i32 = arith.constant 0 : i32
    %c0_i32_0 = arith.constant 0 : i32
    %c0_i32_1 = arith.constant 0 : i32
    return %c0_i32, %c0_i32_0 : i32, i32
  }
  func.func @transform_2(%arg0: i32) -> (i32, i32) {
    %c0_i32 = arith.constant 0 : i32
    %c0_i32_0 = arith.constant 0 : i32
    return %c0_i32, %arg0 : i32, i32
  }
  func.func @transform_3(%arg0: i32) -> (i32, i32) {
    %c0_i32 = arith.constant 0 : i32
    %c0_i32_0 = arith.constant 0 : i32
    return %c0_i32, %arg0 : i32, i32
  }
}

</mosaic_0001>

<llo_original>
// kernel: gated_conv2d.1
$region0: #{gated_conv2d.1}
  #allocation0 [shape = 'u32[]', space=smem, size = 0x4, offset = 0x4, fixed_abs, tag = 'smem constant byte address 0x4 - core index']
  #allocation1 [shape = 'u32[144,128]{1,0:T(1,128)}', space=vmem, size = 0x12000, scoped, tag = 'internal scratch']
  %s0 = inlined_call_operand.vmem [shape: f32[16,36], index: 0, kind: input, shape index: {}]
  %s1 = inlined_call_operand.vmem [shape: f32[16,1], index: 1, kind: input, shape index: {}]
  %s2 = inlined_call_operand.vmem [shape: f32[36,512], index: 2, kind: input, shape index: {}]
  %s3 = inlined_call_operand.vmem [shape: f32[8,512], index: 3, kind: output, shape index: {}]
  %s4 = sld [smem:[#allocation0]]
  $region68: #{gated_conv2d.1} parent=0
    _
  %s6 = ssub.s32 1, %s4
  %s7 = scalar_select 0, %s6, %s4
  $region1: #{gated_conv2d.1} parent=0
    #allocation2 [shape = 'u8[81920]{0}', space=vmem, size = 0x14000, scoped, tag = 'input window, operand 2']
    loop: start=0, step=1, limit=4
    $region2: #{gated_conv2d.1} parent=1 // loop_pre_header
      _
    $region3: #{gated_conv2d.1} parent=1 // loop_header
      %s9 = sphi 0, %s13
      %p10 = scmp.ge.s32.totalorder %s9, 4
      %s17 = sphi 0, %s17
      %s19 = sphi 0, %s17
      %s20 = sphi 0, %s19
      %s34 = sphi 0, %s20
      %s38 = sphi 0, %s38
      %s40 = sphi 0, %s38
      %s41 = sphi 0, %s40
      %s55 = sphi 0, %s41
      %s61 = sphi 0, %s63
      %s64 = sphi 0, %s61
      %s65 = sphi 0, %s64
      %s81 = sphi 0, %s65
      %s87 = sphi 0, %s89
      %s90 = sphi 0, %s87
      %s91 = sphi 0, %s90
      %s107 = sphi 0, %s91
    $region4: #{gated_conv2d.1} parent=1 // loop_header_branch
      %12 = sbr.rel (%p10) target = $region8
    $region5: #{gated_conv2d.1} parent=1 // loop_body
      %s14 = ssub.s32 %s9, 1
      %s15 = ssub.s32 %s9, 2
      %s16 = sadd.s32 %s9, 1
      %s18 = sadd.s32 %s17, 1
      %p21 = scmp.eq.s32.totalorder %s9, 1
      %p22 = scmp.ne.s32.totalorder %s17, %s19
      %p23 = scmp.eq.s32.totalorder %s9, 0
      %p24 = por %p22, %p23
      %p25 = scmp.ne.s32.totalorder %s17, %s19
      %p26 = scmp.eq.s32.totalorder %s14, 1
      %p27 = por %p25, %p26
      %p28 = scmp.ne.s32.totalorder %s19, %s20
      %p29 = scmp.eq.s32.totalorder %s14, 0
      %p30 = por %p28, %p29
      %p31 = scmp.ne.s32.totalorder %s19, %s20
      %p32 = scmp.eq.s32.totalorder %s15, 1
      %p33 = por %p31, %p32
      %p35 = scmp.ne.s32.totalorder %s20, %s34
      %p36 = scmp.eq.s32.totalorder %s15, 0
      %p37 = por %p35, %p36
      %s39 = sadd.s32 %s38, 1
      %p42 = scmp.eq.s32.totalorder %s9, 1
      %p43 = scmp.ne.s32.totalorder %s38, %s40
      %p44 = scmp.eq.s32.totalorder %s9, 0
      %p45 = por %p43, %p44
      %p46 = scmp.ne.s32.totalorder %s38, %s40
      %p47 = scmp.eq.s32.totalorder %s14, 1
      %p48 = por %p46, %p47
      %p49 = scmp.ne.s32.totalorder %s40, %s41
      %p50 = scmp.eq.s32.totalorder %s14, 0
      %p51 = por %p49, %p50
      %p52 = scmp.ne.s32.totalorder %s40, %s41
      %p53 = scmp.eq.s32.totalorder %s15, 1
      %p54 = por %p52, %p53
      %p56 = scmp.ne.s32.totalorder %s41, %s55
      %p57 = scmp.eq.s32.totalorder %s15, 0
      %p58 = por %p56, %p57
      %s59 = ssub.s32 %s9, %s16
      %p60 = scmp.eq.s32.totalorder %s59, 0
      %s62 = sadd.s32 %s61, 1
      %s63 = scalar_select %p60, %s61, %s62
      %p66 = pneg %p60
      %p67 = scmp.eq.s32.totalorder %s9, 1
      %p68 = por %p66, %p67
      %p69 = scmp.ne.s32.totalorder %s61, %s64
      %p70 = scmp.eq.s32.totalorder %s9, 0
      %p71 = por %p69, %p70
      %p72 = scmp.ne.s32.totalorder %s61, %s64
      %p73 = scmp.eq.s32.totalorder %s14, 1
      %p74 = por %p72, %p73
      %p75 = scmp.ne.s32.totalorder %s64, %s65
      %p76 = scmp.eq.s32.totalorder %s14, 0
      %p77 = por %p75, %p76
      %p78 = scmp.ne.s32.totalorder %s64, %s65
      %p79 = scmp.eq.s32.totalorder %s15, 1
      %p80 = por %p78, %p79
      %p82 = scmp.ne.s32.totalorder %s65, %s81
      %p83 = scmp.eq.s32.totalorder %s15, 0
      %p84 = por %p82, %p83
      %s85 = ssub.s32 %s9, %s16
      %p86 = scmp.eq.s32.totalorder %s85, 0
      %s88 = sadd.s32 %s87, 1
      %s89 = scalar_select %p86, %s87, %s88
      %p92 = pneg %p86
      %p93 = scmp.eq.s32.totalorder %s9, 1
      %p94 = por %p92, %p93
      %p95 = scmp.ne.s32.totalorder %s87, %s90
      %p96 = scmp.eq.s32.totalorder %s9, 0
      %p97 = por %p95, %p96
      %p98 = scmp.ne.s32.totalorder %s87, %s90
      %p99 = scmp.eq.s32.totalorder %s14, 1
      %p100 = por %p98, %p99
      %p101 = scmp.ne.s32.totalorder %s90, %s91
      %p102 = scmp.eq.s32.totalorder %s14, 0
      %p103 = por %p101, %p102
      %p104 = scmp.ne.s32.totalorder %s90, %s91
      %p105 = scmp.eq.s32.totalorder %s15, 1
      %p106 = por %p104, %p105
      %p108 = scmp.ne.s32.totalorder %s91, %s107
      %p109 = scmp.eq.s32.totalorder %s15, 0
      %p110 = por %p108, %p109
      %p111 = scmp.le.s32.totalorder 1, %s9
      %p112 = scmp.lt.s32.totalorder %s9, 3
      %p113 = pnand %p111, %p112
      %p114 = pneg %p113
      // Predicated region
      $region9: #{gated_conv2d.1} parent=5 // pred_check
        _
      $region10: #{gated_conv2d.1} parent=5 // pred_check_branch
        %116 = sbr.rel (%p113) target = $region12
      $region11: #{gated_conv2d.1} parent=5 // pred_region
        %s117 = ssub.s32 %s9, 1
        // Predicated region
        $region13: #{gated_conv2d.1} parent=11 // pred_check
          %p118 = pneg %p30
        $region14: #{gated_conv2d.1} parent=11 // pred_check_branch
          %120 = sbr.rel (%p118) target = $region16
        $region15: #{gated_conv2d.1} parent=11 // pred_region
          _
        $region16: #{gated_conv2d.1} parent=11 // pred_fallthru
          _
        // Predicated region
        $region17: #{gated_conv2d.1} parent=11 // pred_check
          %p121 = pneg %p51
        $region18: #{gated_conv2d.1} parent=11 // pred_check_branch
          %123 = sbr.rel (%p121) target = $region20
        $region19: #{gated_conv2d.1} parent=11 // pred_region
          _
        $region20: #{gated_conv2d.1} parent=11 // pred_fallthru
          _
      $region12: #{gated_conv2d.1} parent=5 // pred_fallthru
        _
      %p124 = scmp.lt.s32.totalorder %s9, 2
      // Predicated region
      $region21: #{gated_conv2d.1} parent=5 // pred_check
        %p125 = pneg %p124
      $region22: #{gated_conv2d.1} parent=5 // pred_check_branch
        %127 = sbr.rel (%p125) target = $region24
      $region23: #{gated_conv2d.1} parent=5 // pred_region
        // Predicated region
        $region25: #{gated_conv2d.1} parent=23 // pred_check
          %p128 = pneg %p71
        $region26: #{gated_conv2d.1} parent=23 // pred_check_branch
          %130 = sbr.rel (%p128) target = $region28
        $region27: #{gated_conv2d.1} parent=23 // pred_region
          %s131 = sand.u32 %s61, 1
          %s132 = sand.u32 %s61, 1
          %s133 = smul.addr %s132, 80
          %s134 = scalar_lea.vmem [#allocation2], %s133
          %s135 = smul.u32 2, %s9
          %s136 = smul.addr %s135, 8
          %s137 = scalar_lea.vmem %s2, %s136
          // Predicated region
          $region29: #{gated_conv2d.1} parent=27 // pred_check
            _
          $region30: #{gated_conv2d.1} parent=27 // pred_check_branch
            %139 = sbr.rel (0) target = $region32
          $region31: #{gated_conv2d.1} parent=27 // pred_region
            // Predicated region
            $region33: #{gated_conv2d.1} parent=31 // pred_check
              _
            $region34: #{gated_conv2d.1} parent=31 // pred_check_branch
              %141 = sbr.rel (0) target = $region36
            $region35: #{gated_conv2d.1} parent=31 // pred_region
              loop: start=0, step=1, limit=1
              $region37: #{gated_conv2d.1} parent=35 // loop_pre_header
                _
              $region38: #{gated_conv2d.1} parent=35 // loop_header
                %s143 = sphi 0, %s147
                %p144 = scmp.ge.s32.totalorder %s143, 1
                %s148 = sphi %s137, %s137
                %s149 = sphi %s134, %s134
              $region39: #{gated_conv2d.1} parent=35 // loop_header_branch
                %146 = sbr.rel (%p144) target = $region43
              $region40: #{gated_conv2d.1} parent=35 // loop_body
                %v150 = vld [vmem:[%s148] sm:$0xff]
                %151 = vst [vmem:[%s149] sm:$0xff] %v150
                %v152 = vld [vmem:[%s148 + $0x8] sm:$0xff]
                %153 = vst [vmem:[%s149 + $0x8] sm:$0xff] %v152
                %v154 = vld [vmem:[%s148 + $0x20] sm:$0xff]
                %155 = vst [vmem:[%s149 + $0x10] sm:$0xff] %v154
                %v156 = vld [vmem:[%s148 + $0x28] sm:$0xff]
                %157 = vst [vmem:[%s149 + $0x18] sm:$0xff] %v156
                %v158 = vld [vmem:[%s148 + $0x40] sm:$0xff]
                %159 = vst [vmem:[%s149 + $0x20] sm:$0xff] %v158
                %v160 = vld [vmem:[%s148 + $0x48] sm:$0xff]
                %161 = vst [vmem:[%s149 + $0x28] sm:$0xff] %v160
                %v162 = vld [vmem:[%s148 + $0x60] sm:$0xff]
                %163 = vst [vmem:[%s149 + $0x30] sm:$0xff] %v162
                %v164 = vld [vmem:[%s148 + $0x68] sm:$0xff]
                %165 = vst [vmem:[%s149 + $0x38] sm:$0xff] %v164
                %v166 = vld [vmem:[%s148 + $0x80] sm:$0xff]
                %167 = vst [vmem:[%s149 + $0x40] sm:$0xff] %v166
                %v168 = vld [vmem:[%s148 + $0x88] sm:$0xff]
                %169 = vst [vmem:[%s149 + $0x48] sm:$0xff] %v168
              $region41: #{gated_conv2d.1} parent=35 // loop_footer
                %s147 = sadd.s32 1, %s143
              $region42: #{gated_conv2d.1} parent=35 // loop_footer_branch
                %142 = sbr.rel target = $region38
              $region43: #{gated_conv2d.1} parent=35 // loop_exit
                _
            $region36: #{gated_conv2d.1} parent=31 // pred_fallthru
              _
            // Predicated region
            $region44: #{gated_conv2d.1} parent=31 // pred_check
              _
            $region45: #{gated_conv2d.1} parent=31 // pred_check_branch
              %171 = sbr.rel target = $region47
            $region46: #{gated_conv2d.1} parent=31 // pred_region
              _
            $region47: #{gated_conv2d.1} parent=31 // pred_fallthru
              _
          $region32: #{gated_conv2d.1} parent=27 // pred_fallthru
            _
          %172 = vnop
        $region28: #{gated_conv2d.1} parent=23 // pred_fallthru
          _
      $region24: #{gated_conv2d.1} parent=5 // pred_fallthru
        _
      %p173 = scmp.le.s32.totalorder 1, %s9
      %p174 = scmp.lt.s32.totalorder %s9, 3
      %p175 = pnand %p173, %p174
      %p176 = pneg %p175
      // Predicated region
      $region48: #{gated_conv2d.1} parent=5 // pred_check
        _
      $region49: #{gated_conv2d.1} parent=5 // pred_check_branch
        %178 = sbr.rel (%p175) target = $region51
      $region50: #{gated_conv2d.1} parent=5 // pred_region
        %s179 = ssub.s32 %s9, 1
        %s180 = sand.u32 %s64, 1
        %s181 = sand.u32 %s64, 1
        %s182 = smul.addr %s181, 80
        %s183 = scalar_lea.vmem [#allocation2], %s182
        // Predicated region
        $region52: #{gated_conv2d.1} parent=50 // pred_check
          %p184 = pneg %p77
        $region53: #{gated_conv2d.1} parent=50 // pred_check_branch
          %186 = sbr.rel (%p184) target = $region55
        $region54: #{gated_conv2d.1} parent=50 // pred_region
          _
        $region55: #{gated_conv2d.1} parent=50 // pred_fallthru
          _
        %p187 = pneg %p30
        %p188 = pneg %p27
        %p189 = pneg %p51
        %p190 = pneg %p48
        %s191 = sand.u32 %s64, 1
        %s192 = sand.u32 %s64, 1
        %s193 = smul.addr %s192, 80
        %s194 = scalar_lea.vmem [#allocation2], %s193
        %p195 = pneg %p77
        %p196 = pneg %p74
        %p197 = pneg %p103
        %p198 = pneg %p100
        %s199 = smul.u32 2, %s14
        %p200 = scmp.lt.s32.totalorder %s199, 3
        %s201 = scalar_select %p200, %s199, 3
        %s202 = smul.addr %s201, 8
        %s203 = scalar_lea.vmem %s3, %s202
        %s204 = smul.u32 2, %s14
        %s205 = smul.u32 2, %s14
        %p206 = scmp.lt.s32.totalorder %s205, 3
        %s207 = scalar_select %p206, %s205, 3
        %s208 = smul.addr %s207, 8
        %s209 = scalar_lea.vmem %s3, %s208
        %s210 = smul.u32 2, %s14
        %v211 = vld [vmem:[%s0] sm:$0xff]
        %v212 = vld [vmem:[%s0 + $0x8] sm:$0xff]
        %v213 = vld [vmem:[%s183] sm:$0xff]
        %v214 = vld [vmem:[%s183 + $0x8] sm:$0xff]
        %v215 = vld [vmem:[%s183 + $0x10] sm:$0xff]
        %v216 = vld [vmem:[%s183 + $0x18] sm:$0xff]
        %v217 = vld [vmem:[%s183 + $0x20] sm:$0xff]
        %v218 = vld [vmem:[%s183 + $0x28] sm:$0xff]
        %v219 = vld [vmem:[%s183 + $0x30] sm:$0xff]
        %v220 = vld [vmem:[%s183 + $0x38] sm:$0xff]
        %v221 = vld [vmem:[%s183 + $0x40] sm:$0xf]
        %v222 = vld [vmem:[%s183 + $0x48] sm:$0xf]
        %v223 = vld [vmem:[%s1] sm:$0xff]
        %v224 = vld [vmem:[%s1 + $0x8] sm:$0xff]
        %226 = vset.pattern.permute.xlu0 0
        %227 = vperm.xlu0 %226, %v223
        %v228 = vpop.permute.xlu0 %227
        %231 = vset.pattern.permute.xlu0 0
        %232 = vperm.xlu0 %231, %v224
        %v233 = vpop.permute.xlu0 %232
        %vm235 = vcmask 293888
        %v237 = vsel %vm235, %v211, 0
        %v240 = vsel %vm235, %v212, 0
        %vm242 = vcmask 1043456
        %v244 = vsel %vm242, %v221, 0
        %v247 = vsel %vm242, %v222, 0
        %249 = vmatprep.subr.mxu0 %v214
        %250 = vmatpush1.msra.mxu0 %v213
        %251 = vmatprep.subr.mxu0 %v216
        %252 = vmatpush1.msra.mxu0 %v215
        %253 = vmatprep.subr.mxu0 %v218
        %254 = vmatpush1.msra.mxu0 %v217
        %255 = vmatprep.subr.mxu0 %v220
        %256 = vmatpush1.msra.mxu0 %v219
        %257 = vmatprep.subr.mxu0 %v247
        %258 = vmatpush1.msra.mxu0 %v244
        %259 = vmatprep.subr.mxu0 0.0
        %260 = vmatpush1.msra.mxu0 0.0
        %261 = vmatprep.subr.mxu0 0.0
        %262 = vmatpush1.msra.mxu0 0.0
        %263 = vmatprep.subr.mxu0 0.0
        %264 = vmatpush1.msra.mxu0 0.0
        %265 = vmatprep.subr.mxu0 0.0
        %266 = vmatpush1.msra.mxu0 0.0
        %267 = vmatprep.subr.mxu0 0.0
        %268 = vmatpush1.msra.mxu0 0.0
        %269 = vmatprep.subr.mxu0 0.0
        %270 = vmatpush1.msra.mxu0 0.0
        %271 = vmatprep.subr.mxu0 0.0
        %272 = vmatpush1.msra.mxu0 0.0
        %273 = vmatprep.subr.mxu0 0.0
        %274 = vmatpush1.msra.mxu0 0.0
        %275 = vmatprep.subr.mxu0 0.0
        %276 = vmatpush1.msra.mxu0 0.0
        %277 = vmatprep.subr.mxu0 0.0
        %278 = vmatpush1.msra.mxu0 0.0
        %279 = vmatprep.subr.mxu0 0.0
        %280 = vmatpush1.msra.mxu0 0.0
        %281 = vmatprep.subr.mxu0 0.0
        %282 = vmatpush1.msra.mxu0 0.0
        %283 = vmatprep.subr.mxu0 0.0
        %284 = vmatpush1.msra.mxu0 0.0
        %285 = vmatprep.subr.mxu0 0.0
        %286 = vmatpush1.msra.mxu0 0.0
        %287 = vmatprep.subr.mxu0 0.0
        %288 = vmatpush1.msra.mxu0 0.0
        %289 = vmatprep.subr.mxu0 0.0
        %290 = vmatpush1.msra.mxu0 0.0
        %291 = vmatprep.subr.mxu0 0.0
        %292 = vmatpush1.msra.mxu0 0.0
        %293 = vmatprep.subr.mxu0 0.0
        %294 = vmatpush1.msra.mxu0 0.0
        %295 = vmatprep.subr.mxu0 0.0
        %296 = vmatpush1.msra.mxu0 0.0
        %297 = vmatprep.subr.mxu0 0.0
        %298 = vmatpush1.msra.mxu0 0.0
        %299 = vmatprep.subr.mxu0 0.0
        %300 = vmatpush1.msra.mxu0 0.0
        %301 = vmatprep.subr.mxu0 0.0
        %302 = vmatpush1.msra.mxu0 0.0
        %303 = vmatprep.subr.mxu0 0.0
        %304 = vmatpush1.msra.mxu0 0.0
        %305 = vmatprep.subr.mxu0 0.0
        %306 = vmatpush1.msra.mxu0 0.0
        %307 = vmatprep.subr.mxu0 0.0
        %308 = vmatpush1.msra.mxu0 0.0
        %309 = vmatprep.subr.mxu0 0.0
        %310 = vmatpush1.msra.mxu0 0.0
        %311 = vmatprep.subr.mxu0 0.0
        %312 = vmatpush1.msra.mxu0 0.0
        %313 = vmatprep.mubr.f32.mxu0 0.0
        %314 = vmatmul.mubr.f32.gmra.mrb[0].mxu0 %v237
        %v315 = vpop.f32.mrb[0].mxu0
        %v316 = vadd.f32 %v228, %v315
        %v317 = vpop.f32.mrb[0].mxu0
        %v318 = vadd.f32 %v228, %v317
        %319 = vmatprep.mubr.f32.mxu0 0.0
        %320 = vmatmul.mubr.f32.gmra.mrb[0].mxu0 %v240
        %v321 = vpop.f32.mrb[0].mxu0
        %v322 = vadd.f32 %v233, %v321
        %v323 = vpop.f32.mrb[0].mxu0
        %v324 = vadd.f32 %v233, %v323
        %325 = vdwg.mxu0
        %vm326 = vcmp.ge.f32.partialorder %v316, 0.0
        %vm327 = vcmp.ge.f32.partialorder %v318, 0.0
        %v328 = vmul.f32 %v316, 0.2
        %v329 = vmul.f32 %v318, 0.2
        %v330 = vsel %vm326, %v316, %v328
        %v331 = vsel %vm327, %v318, %v329
        %v332 = vsub.f32 0.0, %v322
        %v333 = vsub.f32 0.0, %v324
        %v334 = vmul.f32 %v332, 1.442695
        %v335 = vpow.pop %v334
        %v336 = vmul.f32 %v333, 1.442695
        %v337 = vpow.pop %v336
        %v338 = vadd.f32 %v335, 1.0
        %v339 = vadd.f32 %v337, 1.0
        %v340 = vrcp.pop %v338
        %v341 = vrcp.pop %v339
        %v342 = vmul.f32 %v330, %v340
        %v343 = vmul.f32 %v331, %v341
        %344 = vst [vmem:[%s209] sm:$0xff] %v342
        %345 = vst [vmem:[%s209 + $0x8] sm:$0xff] %v343
        %s346 = smul.u32 2, %s14
        %p347 = scmp.lt.s32.totalorder %s346, 3
        %s348 = scalar_select %p347, %s346, 3
        %s349 = smul.addr %s348, 8
        %s350 = scalar_lea.vmem %s3, %s349
        // Predicated region
        $region56: #{gated_conv2d.1} parent=50 // pred_check
          %p351 = pneg %p100
        $region57: #{gated_conv2d.1} parent=50 // pred_check_branch
          %353 = sbr.rel (%p351) target = $region59
        $region58: #{gated_conv2d.1} parent=50 // pred_region
          %s354 = smul.u32 2, %s14
        $region59: #{gated_conv2d.1} parent=50 // pred_fallthru
          _
      $region51: #{gated_conv2d.1} parent=5 // pred_fallthru
        _
      %p355 = scmp.le.s32.totalorder 2, %s9
      // Predicated region
      $region60: #{gated_conv2d.1} parent=5 // pred_check
        %p356 = pneg %p355
      $region61: #{gated_conv2d.1} parent=5 // pred_check_branch
        %358 = sbr.rel (%p356) target = $region63
      $region62: #{gated_conv2d.1} parent=5 // pred_region
        %s359 = ssub.s32 %s9, 2
        // Predicated region
        $region64: #{gated_conv2d.1} parent=62 // pred_check
          %p360 = pneg %p106
        $region65: #{gated_conv2d.1} parent=62 // pred_check_branch
          %362 = sbr.rel (%p360) target = $region67
        $region66: #{gated_conv2d.1} parent=62 // pred_region
          %s363 = smul.u32 2, %s15
          %p364 = scmp.lt.s32.totalorder %s363, 3
          %s365 = scalar_select %p364, %s363, 3
          %s366 = smul.addr %s365, 8
          %s367 = scalar_lea.vmem %s3, %s366
        $region67: #{gated_conv2d.1} parent=62 // pred_fallthru
          _
      $region63: #{gated_conv2d.1} parent=5 // pred_fallthru
        _
    $region6: #{gated_conv2d.1} parent=1 // loop_footer
      %s13 = sadd.s32 1, %s9
    $region7: #{gated_conv2d.1} parent=1 // loop_footer_branch
      %8 = sbr.rel target = $region3
    $region8: #{gated_conv2d.1} parent=1 // loop_exit
      _

</llo_original>
